<compile_context>
chip_gen: v6e
topology: v6e:2x2x1
jax: 0.10.0
libtpu: 0.0.40
codegen_flags: <defaults>
</compile_context>

<pallas_src>
import functools

import jax
import jax.numpy as jnp
from jax.experimental import pallas as pl
from jax.experimental.pallas import tpu as pltpu


def _smooth_ce_kernel(logits_ref, targets_ref, out_ref, *,
                      smoothing: float, num_classes: int, batch: int,
                      tile_b: int):
    """One batch tile: writes this tile's (masked) summed loss, lane-dense."""
    x = logits_ref[...].astype(jnp.float32)                  # (TB, C)
    tgt = targets_ref[...]                                    # (TB, 1) int32

    # Numerically stable logsumexp along the class (lane) axis.
    m = jnp.max(x, axis=-1, keepdims=True)                    # (TB, 1)   XLU
    lse = jnp.log(jnp.sum(jnp.exp(x - m), axis=-1, keepdims=True))  # EUP + XLU

    on = 1.0 - smoothing
    off = smoothing / (num_classes - 1) if num_classes > 1 else 0.0
    coef = off * (num_classes - 1) + on                        # == 1.0 when C > 1

    # Fused reduction: sum_c(t_c * x_c) with t_c = on at target column, off else.
    col = jax.lax.broadcasted_iota(jnp.int32, x.shape, 1)      # (TB, C)
    w = jnp.where(col == tgt, jnp.float32(on), jnp.float32(off))
    weighted = jnp.sum(x * w, axis=-1, keepdims=True)          # (TB, 1)   XLU

    # loss_row = sum_c(-t_c * logp_c) = coef*(m + lse) - sum_c(t_c * x_c)
    per_row = jnp.float32(coef) * (m + lse) - weighted         # (TB, 1)

    # Mask rows beyond the true batch (ragged last tile reads unspecified data;
    # select semantics keep NaN/Inf from propagating).
    row = (jax.lax.broadcasted_iota(jnp.int32, per_row.shape, 0)
           + pl.program_id(0) * tile_b)
    per_row = jnp.where(row < batch, per_row, 0.0)

    # Per-tile partial sum, written as a full lane-dense (1, 8, 128) block so the
    # writeback is a single unmasked vreg store.
    partial = jnp.sum(per_row)
    out_ref[...] = jnp.broadcast_to(partial, out_ref.shape).astype(jnp.float32)


def _choose_tile_b(batch: int, num_classes: int, itemsize: int) -> int:
    """Byte-budgeted batch tile (mult of 8 for f32, 16 for bf16)."""
    align = 16 if itemsize < 4 else 8
    # Per-row VMEM estimate: double-buffered logits + double-buffered targets
    # (a (TB,1) int32 block lane-pads to 128 lanes -> 512 B/row per buffer)
    # + ~6 full-tile f32 temporaries inside the kernel body.
    per_row = 2 * num_classes * itemsize + 6 * num_classes * 4 + 2 * 512
    budget = 24 * 1024 * 1024
    tb = max(align, (budget // per_row) // align * align)
    # Prefer >= 2 grid tiles so the 'parallel' batch axis can use both
    # TensorCores on v7x megacore (harmless extra step on v5e/v6e).
    if batch > 2 * align:
        half = pl.cdiv(pl.cdiv(batch, 2), align) * align
        tb = min(tb, half)
    # Never exceed the (aligned) batch itself.
    tb = min(tb, pl.cdiv(batch, align) * align)
    return max(align, int(tb))


def smooth_cross_entropy_loss(logits: jax.Array, targets: jax.Array,
                              smoothing: float = 0.0,
                              tile_b: int | None = None) -> jax.Array:
    """Pallas TPU implementation of SmoothCrossEntropyLoss.forward.

    Args:
      logits:  (B, C) float array (f32 or bf16; math is done in f32).
      targets: (B,) integer class indices.
      smoothing: label smoothing in [0, 1).
      tile_b: optional batch-tile override (multiple of 8).

    Returns:
      scalar float32 loss.
    """
    if not 0 <= smoothing < 1:
        raise ValueError("Smoothing value must be in [0, 1[.")
    B, C = logits.shape
    itemsize = logits.dtype.itemsize
    tb = tile_b if tile_b is not None else _choose_tile_b(B, C, itemsize)
    if tb % 8 != 0:
        raise ValueError("tile_b must be a multiple of 8.")
    num_tiles = pl.cdiv(B, tb)
    b_pad = num_tiles * tb

    # Only the tiny targets array is padded; logits are never copied in HBM —
    # the ragged last logits tile is handled by the in-kernel row mask.
    targets32 = targets.astype(jnp.int32)
    if b_pad != B:
        targets32 = jnp.pad(targets32, ((0, b_pad - B),))
    targets2d = targets32.reshape(b_pad, 1)

    kernel = functools.partial(_smooth_ce_kernel, smoothing=float(smoothing),
                               num_classes=int(C), batch=int(B), tile_b=int(tb))

    # VMEM budget derived from the actual footprint (kept <= 48 MiB for v7x).
    est_bytes = (2 * tb * C * itemsize          # double-buffered logits tiles
                 + 2 * tb * 512                 # lane-padded targets buffers
                 + 2 * 8 * 128 * 4              # output blocks
                 + 6 * tb * C * 4               # in-kernel f32 temporaries
                 + (4 << 20))                   # slack
    vmem_limit = int(min(48 << 20, max(32 << 20, est_bytes)))

    partials = pl.pallas_call(
        kernel,
        out_shape=jax.ShapeDtypeStruct((num_tiles, 8, 128), jnp.float32),
        grid=(num_tiles,),
        in_specs=[
            pl.BlockSpec((tb, C), lambda i: (i, 0)),   # logits tile
            pl.BlockSpec((tb, 1), lambda i: (i, 0)),   # targets tile
        ],
        out_specs=pl.BlockSpec((1, 8, 128), lambda i: (i, 0, 0)),
        compiler_params=pltpu.CompilerParams(
            # Independent batch tiles -> shard across TCs on v7x megacore.
            dimension_semantics=("parallel",),
            vmem_limit_bytes=vmem_limit,
        ),
    )(logits, targets2d)

    return jnp.sum(partials[:, 0, 0]) / jnp.float32(B)


def _reference_loss(logits, targets, smoothing):
    # Pure-JAX reference mirroring the PyTorch module, for correctness check.
    B, C = logits.shape
    smooth = jnp.full((B, C), smoothing / (C - 1), dtype=jnp.float32)
    smooth = smooth.at[jnp.arange(B), targets].set(1.0 - smoothing)
    logp = jax.nn.log_softmax(logits.astype(jnp.float32), axis=-1)
    return jnp.mean(jnp.sum(-smooth * logp, axis=-1))


if __name__ == "__main__":
    key = jax.random.PRNGKey(0)
    k1, k2, k3, k4, k5, k6 = jax.random.split(key, 6)
    smoothing = 0.1

    # Case 1: small shapes implied by (batch, nb_classes).
    B, C = 8, 32
    logits = jax.random.normal(k1, (B, C), dtype=jnp.float32)
    targets = jax.random.randint(k2, (B,), 0, C, dtype=jnp.int32)
    loss = jax.block_until_ready(smooth_cross_entropy_loss(logits, targets, smoothing))
    ref = _reference_loss(logits, targets, smoothing)
    assert jnp.allclose(loss, ref, atol=1e-5, rtol=1e-5), (loss, ref)

    # Case 2: ragged batch, default tiling (2 tiles, masked last tile, no pad copy).
    B2, C2 = 21, 32
    logits2 = jax.random.normal(k3, (B2, C2), dtype=jnp.float32)
    targets2 = jax.random.randint(k4, (B2,), 0, C2, dtype=jnp.int32)
    loss2 = jax.block_until_ready(smooth_cross_entropy_loss(logits2, targets2, smoothing))
    ref2 = _reference_loss(logits2, targets2, smoothing)
    assert jnp.allclose(loss2, ref2, atol=1e-5, rtol=1e-5), (loss2, ref2)

    # Case 2b: same data, forced tiny tile -> 3-tile grid with ragged last tile.
    loss2b = jax.block_until_ready(
        smooth_cross_entropy_loss(logits2, targets2, smoothing, tile_b=8))
    assert jnp.allclose(loss2b, ref2, atol=1e-5, rtol=1e-5), (loss2b, ref2)

    # Case 3: bf16 logits (f32 accumulation inside the kernel).
    B3, C3 = 16, 32
    logits3 = jax.random.normal(k5, (B3, C3), dtype=jnp.float32).astype(jnp.bfloat16)
    targets3 = jax.random.randint(k6, (B3,), 0, C3, dtype=jnp.int32)
    loss3 = jax.block_until_ready(smooth_cross_entropy_loss(logits3, targets3, smoothing))
    ref3 = _reference_loss(logits3, targets3, smoothing)
    assert jnp.allclose(loss3, ref3, atol=1e-5, rtol=1e-5), (loss3, ref3)

    print("KERNEL_OK")
</pallas_src>

<mosaic_0001>
module attributes {stable_mosaic.version = 11 : i64} {
  func.func @_smooth_ce_kernel(%arg0: i32, %arg1: memref<8x32xf32, #tpu.memory_space<vmem>>, %arg2: memref<8x1xi32, #tpu.memory_space<vmem>>, %arg3: memref<1x8x128xf32, #tpu.memory_space<vmem>>) attributes {dimension_semantics = [#tpu.dimension_semantics<parallel>], iteration_bounds = array<i64: 1>, scalar_prefetch = 0 : i64, scratch_operands = 0 : i64, tpu.core_type = #tpu.core_type<tc>, window_params = [{transform_indices = @transform_0, window_bounds = array<i64: 8, 32>}, {transform_indices = @transform_1, window_bounds = array<i64: 8, 1>}, {transform_indices = @transform_2, window_bounds = array<i64: 1, 8, 128>}]} {
    %c0 = arith.constant 0 : index
    %c0_0 = arith.constant 0 : index
    %0 = vector.load %arg1[%c0, %c0_0] : memref<8x32xf32, #tpu.memory_space<vmem>>, vector<8x32xf32>
    %c0_1 = arith.constant 0 : index
    %c0_2 = arith.constant 0 : index
    %1 = vector.load %arg2[%c0_1, %c0_2] : memref<8x1xi32, #tpu.memory_space<vmem>>, vector<8x1xi32>
    %cst = arith.constant dense<0xFF800000> : vector<8xf32>
    %2 = vector.multi_reduction <maximumf>, %0, %cst [1] : vector<8x32xf32> to vector<8xf32>
    %3 = vector.shape_cast %2 : vector<8xf32> to vector<8x1xf32>
    %4 = vector.broadcast %3 : vector<8x1xf32> to vector<8x32xf32>
    %5 = arith.subf %0, %4 : vector<8x32xf32>
    %6 = math.exp %5 : vector<8x32xf32>
    %cst_3 = arith.constant dense<0.000000e+00> : vector<8xf32>
    %7 = vector.multi_reduction <add>, %6, %cst_3 [1] : vector<8x32xf32> to vector<8xf32>
    %8 = vector.shape_cast %7 : vector<8xf32> to vector<8x1xf32>
    %9 = math.log %8 : vector<8x1xf32>
    %10 = tpu.iota {dimensions = array<i32: 1>} : vector<8x32xi32>
    %11 = vector.broadcast %1 : vector<8x1xi32> to vector<8x32xi32>
    %12 = arith.cmpi eq, %10, %11 : vector<8x32xi32>
    %cst_4 = arith.constant 0.899999976 : f32
    %cst_5 = arith.constant 0.0032258064 : f32
    %13 = vector.broadcast %cst_4 : f32 to vector<8x32xf32>
    %14 = vector.broadcast %cst_5 : f32 to vector<8x32xf32>
    %15 = arith.select %12, %13, %14 : vector<8x32xi1>, vector<8x32xf32>
    %16 = arith.mulf %0, %15 : vector<8x32xf32>
    %cst_6 = arith.constant dense<0.000000e+00> : vector<8xf32>
    %17 = vector.multi_reduction <add>, %16, %cst_6 [1] : vector<8x32xf32> to vector<8xf32>
    %18 = vector.shape_cast %17 : vector<8xf32> to vector<8x1xf32>
    %19 = arith.addf %3, %9 : vector<8x1xf32>
    %cst_7 = arith.constant 1.000000e+00 : f32
    %20 = vector.broadcast %cst_7 : f32 to vector<8x1xf32>
    %21 = arith.mulf %20, %19 : vector<8x1xf32>
    %22 = arith.subf %21, %18 : vector<8x1xf32>
    %23 = tpu.iota {dimensions = array<i32: 0>} : vector<8x1xi32>
    %c8_i32 = arith.constant 8 : i32
    %24 = arith.muli %arg0, %c8_i32 : i32
    %25 = vector.broadcast %24 : i32 to vector<8x1xi32>
    %26 = arith.addi %23, %25 : vector<8x1xi32>
    %c8_i32_8 = arith.constant 8 : i32
    %27 = vector.broadcast %c8_i32_8 : i32 to vector<8x1xi32>
    %28 = arith.cmpi slt, %26, %27 : vector<8x1xi32>
    %cst_9 = arith.constant 0.000000e+00 : f32
    %29 = vector.broadcast %cst_9 : f32 to vector<8x1xf32>
    %30 = arith.select %28, %22, %29 : vector<8x1xi1>, vector<8x1xf32>
    %31 = vector.shape_cast %30 : vector<8x1xf32> to vector<1x8x1xf32>
    %cst_10 = arith.constant dense<0.000000e+00> : vector<1xf32>
    %32 = vector.multi_reduction <add>, %31, %cst_10 [1, 2] : vector<1x8x1xf32> to vector<1xf32>
    %33 = vector.shape_cast %32 : vector<1xf32> to vector<1x1x1xf32>
    %34 = vector.extract %33[0, 0, 0] : f32 from vector<1x1x1xf32>
    %35 = vector.broadcast %34 : f32 to vector<1x8x128xf32>
    %c0_11 = arith.constant 0 : index
    %c0_12 = arith.constant 0 : index
    %c0_13 = arith.constant 0 : index
    %36 = vector.load %arg3[%c0_11, %c0_12, %c0_13] : memref<1x8x128xf32, #tpu.memory_space<vmem>>, vector<1x8x128xf32>
    tpu.vector_store %arg3[%c0_11, %c0_12, %c0_13], %35 {strides = array<i32>} : memref<1x8x128xf32, #tpu.memory_space<vmem>>, vector<1x8x128xf32>,
    return
  }
  func.func @transform_0(%arg0: i32) -> (i32, i32) {
    %c0_i32 = arith.constant 0 : i32
    %c0_i32_0 = arith.constant 0 : i32
    return %arg0, %c0_i32 : i32, i32
  }
  func.func @transform_1(%arg0: i32) -> (i32, i32) {
    %c0_i32 = arith.constant 0 : i32
    %c0_i32_0 = arith.constant 0 : i32
    return %arg0, %c0_i32 : i32, i32
  }
  func.func @transform_2(%arg0: i32) -> (i32, i32, i32) {
    %c0_i32 = arith.constant 0 : i32
    %c0_i32_0 = arith.constant 0 : i32
    %c0_i32_1 = arith.constant 0 : i32
    return %arg0, %c0_i32, %c0_i32_0 : i32, i32, i32
  }
}

</mosaic_0001>

<llo_original>
// kernel: tpu_custom_call.1
$region0: #{tpu_custom_call.1}
  #allocation0 [shape = 'u32[]', space=smem, size = 0x4, offset = 0x4, fixed_abs, tag = 'smem constant byte address 0x4 - core index']
  #allocation1 [shape = 'u32[144,128]{1,0:T(1,128)}', space=vmem, size = 0x12000, scoped, tag = 'internal scratch']
  %s0 = inlined_call_operand.vmem [shape: f32[8,32], index: 0, kind: input, shape index: {}]
  %s1 = inlined_call_operand.vmem [shape: s32[8,1], index: 1, kind: input, shape index: {}]
  %s2 = inlined_call_operand.hbm [shape: f32[1,8,128], index: 2, kind: output, shape index: {}]
  %s3 = sld [smem:[#allocation0]]
  $region18: #{tpu_custom_call.1} parent=0
    _
  %s5 = ssub.s32 1, %s3
  %s6 = scalar_select 0, %s5, %s3
  $region1: #{tpu_custom_call.1} parent=0
    #allocation2 [shape = 'u8[4096]{0}', space=vmem, size = 0x1000, scoped, tag = 'output window, operand 0, single buffered']
    #allocation3 [shape = 's32[1]{0}', space=sflag, size = 0x4, scoped, tag = 'scoped memory for tpu_custom_call.1']
    %7 = vsyncpa [#allocation3], 0
    // Predicated region
    $region2: #{tpu_custom_call.1} parent=1 // pred_check
      _
    $region3: #{tpu_custom_call.1} parent=1 // pred_check_branch
      %9 = sbr.rel (0) target = $region5
    $region4: #{tpu_custom_call.1} parent=1 // pred_region
      _
    $region5: #{tpu_custom_call.1} parent=1 // pred_fallthru
      _
    // Predicated region
    $region6: #{tpu_custom_call.1} parent=1 // pred_check
      _
    $region7: #{tpu_custom_call.1} parent=1 // pred_check_branch
      %11 = sbr.rel (0) target = $region9
    $region8: #{tpu_custom_call.1} parent=1 // pred_region
      _
    $region9: #{tpu_custom_call.1} parent=1 // pred_fallthru
      _
    %v12 = vld [vmem:[%s0] sm:$0xff]
    %v13 = vld [vmem:[%s1] sm:$0xff]
    %vm14 = vcmask 261120
    %v15 = vsel %vm14, %v12, -inf
    %16 = vmax.xlane.f32.xlu0 %v15
    %v17 = vpop.xlane.xlu0 %16
    %v18 = vsub.f32 %v12, %v17
    %v19 = vmul.f32 %v18, 1.442695
    %v20 = vpow.pop %v19
    %v21 = vsel %vm14, %v20, 0.0
    %22 = vadd.xlane.f32.xlu0 %v21
    %v23 = vpop.xlane.xlu0 %22
    %v24 = vlog2.pop %v23
    %v25 = vmul.f32 %v24, 0.6931472
    %v26 = vlaneseq
    %v27 = vand.u32 %v26, 127
    %28 = vset.pattern.permute.xlu0 0
    %29 = vperm.xlu0 %28, %v13
    %v30 = vpop.permute.xlu0 %29
    %vm31 = vcmp.eq.s32.totalorder %v27, %v30
    %v32 = vsel %vm31, 0.9, 0.0032258064
    %v33 = vmul.f32 %v12, %v32
    %v34 = vsel %vm14, %v33, 0.0
    %35 = vadd.xlane.f32.xlu0 %v34
    %v36 = vpop.xlane.xlu0 %35
    %v37 = vadd.f32 %v17, %v25
    %v38 = vsub.f32 %v37, %v36
    %v39 = vlaneseq
    %v40 = vshrl.u32 %v39, 7
    %s41 = smul.u32 0, 8
    %v42 = vstv %s41
    %v43 = vadd.s32 %v40, %v42
    %vm44 = vcmp.lt.s32.totalorder %v43, 8
    %v45 = vsel %vm44, %v38, 0.0
    %vm46 = vcmask 7168
    %v47 = vsel %vm46, %v45, 0.0
    %48 = vadd.xlane.f32.xlu0 %v47
    %v49 = vpop.xlane.xlu0 %48
    %v50 = vrot.slane %v49, 4
    %v51 = vadd.f32 %v49, %v50
    %v52 = vrot.slane %v51, 2
    %v53 = vadd.f32 %v51, %v52
    %v54 = vrot.slane %v53, 1
    %v55 = vadd.f32 %v53, %v54
    %s56 = vtos %v55
    %v57 = vstv %s56
    %58 = vst [vmem:[#allocation2] sm:$0xff] %v57
    // Predicated region
    $region10: #{tpu_custom_call.1} parent=1 // pred_check
      _
    $region11: #{tpu_custom_call.1} parent=1 // pred_check_branch
      %60 = sbr.rel (0) target = $region13
    $region12: #{tpu_custom_call.1} parent=1 // pred_region
      %s62 = ssub.s32 128, 128
      %63 = vsyncadd [#allocation3], %s62
      %s65 = sshll.u32 [#allocation2], 4
      %s66 = int_to_ptr.vmem [resolvable:$true] %s65
      %68 = dma.vmem_to_hbm [thread:$0]  %s66, 128, %s2, [#allocation3]
    $region13: #{tpu_custom_call.1} parent=1 // pred_fallthru
      _
    // Predicated region
    $region14: #{tpu_custom_call.1} parent=1 // pred_check
      _
    $region15: #{tpu_custom_call.1} parent=1 // pred_check_branch
      %70 = sbr.rel (0) target = $region17
    $region16: #{tpu_custom_call.1} parent=1 // pred_region
      %71 = dma.done [#allocation3], 128
    $region17: #{tpu_custom_call.1} parent=1 // pred_fallthru
      _
    %72 = vsyncpa [#allocation3], 1

</llo_original>
